<compile_context>
chip_gen: v6e
topology: v6e:2x2x1
jax: 0.10.0
libtpu: 0.0.40
codegen_flags: <defaults>
</compile_context>

<pallas_src>
import jax
import jax.numpy as jnp
import numpy as np
from jax import lax
from jax.experimental import pallas as pl
from jax.experimental.pallas import tpu as pltpu


def _softmax_last(x):
    m = jnp.max(x, axis=-1, keepdims=True)
    e = jnp.exp(x - m)
    # exact reciprocal (approx=False) keeps the 1e-5 tolerance vs. the reference
    return e * pl.reciprocal(jnp.sum(e, axis=-1, keepdims=True), approx=False)


def _make_kernel(heads, mem_size):
    def kernel(q_ref, k_ref, vp_ref, bx_ref, o_ref):
        q = q_ref[...]                        # [bt, key_dim]
        k_all = k_ref[...]                    # [H*N, key_dim]   (precomputed)
        vp = vp_ref[...]                      # [H*N, val_dim]   (Wx folded in)

        # ONE MXU push for all heads' logits: contract key_dim of q with
        # key_dim of k_all (no materialized transpose) -> [bt, H*N].
        a_all = lax.dot_general(q, k_all, (((1,), (1,)), ((), ())),
                                preferred_element_type=jnp.float32)

        # Per-head softmax over mem_size on static lane slices, then
        # acc += w_h @ v'_h (final projection already folded into v').
        # `heads` is a small compile-time constant -> fully unrolled.
        acc = None
        for h in range(heads):
            sl = slice(h * mem_size, (h + 1) * mem_size)
            w_h = _softmax_last(a_all[:, sl])                    # [bt, N]
            term = jnp.dot(w_h, vp[sl, :],
                           preferred_element_type=jnp.float32)   # [bt, val_dim]
            acc = term if acc is None else acc + term

        o_ref[...] = jnp.maximum(acc + bx_ref[...], 0.0)

    return kernel


def multi_head_memory(q, mem, wk, bk, wv, bv, wx, bx, *, block_b=1024, matmul_dtype=None):
    """Forward pass of MultiHeadMemory.

    matmul_dtype: optionally cast the MXU operands (q, k_all, v') to e.g.
    jnp.bfloat16 on v6e/v7x; elementwise math stays f32 (v5e has no bf16
    VPU/EUP). Default None keeps exact-f32 numerics for the 1e-5 check.
    """
    B, key_dim = q.shape
    heads, mem_size, mem_dim = mem.shape
    val_dim = wv.shape[1]

    # ---- batch-invariant precompute (tiny [H*N, ...] XLA ops, done once) ----
    mem2 = mem.reshape(heads * mem_size, mem_dim)
    k_all = jax.nn.softmax(jnp.dot(mem2, wk) + bk, axis=-1)      # [H*N, key_dim]
    v_all = jax.nn.relu(jnp.dot(mem2, wv) + bv)                  # [H*N, val_dim]
    # Fold the final projection into V:
    #   sum_h (w_h @ v_h) @ Wx_h == sum_h w_h @ (v_h @ Wx_h)
    vp = jnp.einsum(
        'hnv,hvo->hno',
        v_all.reshape(heads, mem_size, val_dim),
        wx.reshape(heads, val_dim, val_dim),
    ).reshape(heads * mem_size, val_dim)                         # [H*N, val_dim]

    if matmul_dtype is not None:
        q = q.astype(matmul_dtype)
        k_all = k_all.astype(matmul_dtype)
        vp = vp.astype(matmul_dtype)

    # ---- batch tiling: large tiles, but keep >= 2 grid steps for v7x's 2 TCs ----
    if B > 8:
        half = ((B + 1) // 2 + 7) // 8 * 8        # ceil(B/2) rounded up to x8
        bt = max(8, min(block_b, half))
    else:
        bt = B
    grid = (pl.cdiv(B, bt),)                      # partial last block is masked

    def rep(shape):
        n = len(shape)
        return pl.BlockSpec(shape, lambda i, n=n: (0,) * n)      # VMEM-resident

    out = pl.pallas_call(
        _make_kernel(heads, mem_size),
        grid=grid,
        in_specs=[
            pl.BlockSpec((bt, key_dim), lambda i: (i, 0)),       # q: tiled over batch
            rep(k_all.shape), rep(vp.shape), rep(bx.shape),
        ],
        out_specs=pl.BlockSpec((bt, val_dim), lambda i: (i, 0)),
        out_shape=jax.ShapeDtypeStruct((B, val_dim), jnp.float32),
        compiler_params=pltpu.CompilerParams(dimension_semantics=("parallel",)),
    )(q, k_all, vp, bx)
    return out


def reference(q, mem, wk, bk, wv, bv, wx, bx):
    k = jax.nn.softmax(jnp.einsum('hnd,dk->hnk', mem, wk) + bk[0], axis=-1)
    v = jax.nn.relu(jnp.einsum('hnd,dv->hnv', mem, wv) + bv[0])
    a = jnp.einsum('bk,hnk->bhn', q, k)
    w = jax.nn.softmax(a, axis=-1)
    o = jnp.einsum('bhn,hnv->bhv', w, v)
    x = o.reshape(o.shape[0], -1)
    return jax.nn.relu(x @ wx + bx[0])


if __name__ == "__main__":
    # Small shapes implied by the module's forward.
    B, heads, mem_size, mem_dim, key_dim, val_dim = 2, 4, 8, 32, 16, 32

    key = jax.random.PRNGKey(0)
    ks = jax.random.split(key, 9)
    q   = jax.random.normal(ks[0], (B, key_dim), dtype=jnp.float32)
    mem = jax.random.normal(ks[1], (heads, mem_size, mem_dim), dtype=jnp.float32)
    # Linear params (weights stored as [in, out]).
    wk = jax.random.normal(ks[2], (mem_dim, key_dim), dtype=jnp.float32) * 0.1
    bk = jax.random.normal(ks[3], (1, key_dim), dtype=jnp.float32) * 0.1
    wv = jax.random.normal(ks[4], (mem_dim, val_dim), dtype=jnp.float32) * 0.1
    bv = jax.random.normal(ks[5], (1, val_dim), dtype=jnp.float32) * 0.1
    wx = jax.random.normal(ks[6], (heads * val_dim, val_dim), dtype=jnp.float32) * 0.1
    bx = jax.random.normal(ks[7], (1, val_dim), dtype=jnp.float32) * 0.1

    # Small-batch path (single grid step, full-array blocks).
    out = jax.block_until_ready(multi_head_memory(q, mem, wk, bk, wv, bv, wx, bx))
    ref = jax.block_until_ready(reference(q, mem, wk, bk, wv, bv, wx, bx))
    np.testing.assert_allclose(np.asarray(out), np.asarray(ref), rtol=1e-5, atol=1e-5)

    # Larger-batch path: exercises the multi-step parallel grid over batch tiles.
    qb = jax.random.normal(ks[8], (256, key_dim), dtype=jnp.float32)
    outb = jax.block_until_ready(multi_head_memory(qb, mem, wk, bk, wv, bv, wx, bx))
    refb = jax.block_until_ready(reference(qb, mem, wk, bk, wv, bv, wx, bx))
    np.testing.assert_allclose(np.asarray(outb), np.asarray(refb), rtol=1e-5, atol=1e-5)

    # Non-divisible batch: partial last block is masked by Pallas (no pad/slice).
    qo = jax.random.normal(ks[8], (100, key_dim), dtype=jnp.float32)
    outo = jax.block_until_ready(multi_head_memory(qo, mem, wk, bk, wv, bv, wx, bx))
    refo = jax.block_until_ready(reference(qo, mem, wk, bk, wv, bv, wx, bx))
    np.testing.assert_allclose(np.asarray(outo), np.asarray(refo), rtol=1e-5, atol=1e-5)

    print("KERNEL_OK")
</pallas_src>

<mosaic_0001>
module attributes {stable_mosaic.version = 11 : i64} {
  func.func @kernel(%arg0: i32, %arg1: memref<2x16xf32, #tpu.memory_space<vmem>>, %arg2: memref<32x16xf32, #tpu.memory_space<vmem>>, %arg3: memref<32x32xf32, #tpu.memory_space<vmem>>, %arg4: memref<1x32xf32, #tpu.memory_space<vmem>>, %arg5: memref<2x32xf32, #tpu.memory_space<vmem>>) attributes {dimension_semantics = [#tpu.dimension_semantics<parallel>], iteration_bounds = array<i64: 1>, scalar_prefetch = 0 : i64, scratch_operands = 0 : i64, tpu.core_type = #tpu.core_type<tc>, window_params = [{transform_indices = @transform_0, window_bounds = array<i64: 2, 16>}, {pipeline_mode = #tpu.pipeline_mode<synchronous>, transform_indices = @transform_1, window_bounds = array<i64: 32, 16>}, {pipeline_mode = #tpu.pipeline_mode<synchronous>, transform_indices = @transform_2, window_bounds = array<i64: 32, 32>}, {pipeline_mode = #tpu.pipeline_mode<synchronous>, transform_indices = @transform_3, window_bounds = array<i64: 1, 32>}, {transform_indices = @transform_4, window_bounds = array<i64: 2, 32>}]} {
    %c0 = arith.constant 0 : index
    %c0_0 = arith.constant 0 : index
    %0 = vector.load %arg1[%c0, %c0_0] : memref<2x16xf32, #tpu.memory_space<vmem>>, vector<2x16xf32>
    %c0_1 = arith.constant 0 : index
    %c0_2 = arith.constant 0 : index
    %1 = vector.load %arg2[%c0_1, %c0_2] : memref<32x16xf32, #tpu.memory_space<vmem>>, vector<32x16xf32>
    %c0_3 = arith.constant 0 : index
    %c0_4 = arith.constant 0 : index
    %2 = vector.load %arg3[%c0_3, %c0_4] : memref<32x32xf32, #tpu.memory_space<vmem>>, vector<32x32xf32>
    %cst = arith.constant dense<0.000000e+00> : vector<2x32xf32>
    %3 = tpu.matmul %0, %1, %cst {dimension_numbers = #tpu.dot_dimension_numbers<[1], [1], [0], [0], [0, 0, 1, 0], [], []>} : vector<2x16xf32>, vector<32x16xf32>, vector<2x32xf32> -> vector<2x32xf32>
    %4 = vector.extract_strided_slice %3 {offsets = [0, 0], sizes = [2, 8], strides = [1, 1]} : vector<2x32xf32> to vector<2x8xf32>
    %cst_5 = arith.constant dense<0xFF800000> : vector<2xf32>
    %5 = vector.multi_reduction <maximumf>, %4, %cst_5 [1] : vector<2x8xf32> to vector<2xf32>
    %6 = vector.shape_cast %5 : vector<2xf32> to vector<2x1xf32>
    %7 = vector.broadcast %6 : vector<2x1xf32> to vector<2x8xf32>
    %8 = arith.subf %4, %7 : vector<2x8xf32>
    %9 = math.exp %8 : vector<2x8xf32>
    %cst_6 = arith.constant dense<0.000000e+00> : vector<2xf32>
    %10 = vector.multi_reduction <add>, %9, %cst_6 [1] : vector<2x8xf32> to vector<2xf32>
    %11 = vector.shape_cast %10 : vector<2xf32> to vector<2x1xf32>
    %12 = tpu.reciprocal %11 : vector<2x1xf32> -> vector<2x1xf32>
    %13 = vector.broadcast %12 : vector<2x1xf32> to vector<2x8xf32>
    %14 = arith.mulf %9, %13 : vector<2x8xf32>
    %15 = vector.extract_strided_slice %2 {offsets = [0, 0], sizes = [8, 32], strides = [1, 1]} : vector<32x32xf32> to vector<8x32xf32>
    %cst_7 = arith.constant dense<0.000000e+00> : vector<2x32xf32>
    %16 = tpu.matmul %14, %15, %cst_7 {dimension_numbers = #tpu.dot_dimension_numbers<[1], [0], [0], [1], [0, 0, 1, 1], [], []>} : vector<2x8xf32>, vector<8x32xf32>, vector<2x32xf32> -> vector<2x32xf32>
    %17 = vector.extract_strided_slice %3 {offsets = [0, 8], sizes = [2, 8], strides = [1, 1]} : vector<2x32xf32> to vector<2x8xf32>
    %cst_8 = arith.constant dense<0xFF800000> : vector<2xf32>
    %18 = vector.multi_reduction <maximumf>, %17, %cst_8 [1] : vector<2x8xf32> to vector<2xf32>
    %19 = vector.shape_cast %18 : vector<2xf32> to vector<2x1xf32>
    %20 = vector.broadcast %19 : vector<2x1xf32> to vector<2x8xf32>
    %21 = arith.subf %17, %20 : vector<2x8xf32>
    %22 = math.exp %21 : vector<2x8xf32>
    %cst_9 = arith.constant dense<0.000000e+00> : vector<2xf32>
    %23 = vector.multi_reduction <add>, %22, %cst_9 [1] : vector<2x8xf32> to vector<2xf32>
    %24 = vector.shape_cast %23 : vector<2xf32> to vector<2x1xf32>
    %25 = tpu.reciprocal %24 : vector<2x1xf32> -> vector<2x1xf32>
    %26 = vector.broadcast %25 : vector<2x1xf32> to vector<2x8xf32>
    %27 = arith.mulf %22, %26 : vector<2x8xf32>
    %28 = vector.extract_strided_slice %2 {offsets = [8, 0], sizes = [8, 32], strides = [1, 1]} : vector<32x32xf32> to vector<8x32xf32>
    %cst_10 = arith.constant dense<0.000000e+00> : vector<2x32xf32>
    %29 = tpu.matmul %27, %28, %cst_10 {dimension_numbers = #tpu.dot_dimension_numbers<[1], [0], [0], [1], [0, 0, 1, 1], [], []>} : vector<2x8xf32>, vector<8x32xf32>, vector<2x32xf32> -> vector<2x32xf32>
    %30 = arith.addf %16, %29 : vector<2x32xf32>
    %31 = vector.extract_strided_slice %3 {offsets = [0, 16], sizes = [2, 8], strides = [1, 1]} : vector<2x32xf32> to vector<2x8xf32>
    %cst_11 = arith.constant dense<0xFF800000> : vector<2xf32>
    %32 = vector.multi_reduction <maximumf>, %31, %cst_11 [1] : vector<2x8xf32> to vector<2xf32>
    %33 = vector.shape_cast %32 : vector<2xf32> to vector<2x1xf32>
    %34 = vector.broadcast %33 : vector<2x1xf32> to vector<2x8xf32>
    %35 = arith.subf %31, %34 : vector<2x8xf32>
    %36 = math.exp %35 : vector<2x8xf32>
    %cst_12 = arith.constant dense<0.000000e+00> : vector<2xf32>
    %37 = vector.multi_reduction <add>, %36, %cst_12 [1] : vector<2x8xf32> to vector<2xf32>
    %38 = vector.shape_cast %37 : vector<2xf32> to vector<2x1xf32>
    %39 = tpu.reciprocal %38 : vector<2x1xf32> -> vector<2x1xf32>
    %40 = vector.broadcast %39 : vector<2x1xf32> to vector<2x8xf32>
    %41 = arith.mulf %36, %40 : vector<2x8xf32>
    %42 = vector.extract_strided_slice %2 {offsets = [16, 0], sizes = [8, 32], strides = [1, 1]} : vector<32x32xf32> to vector<8x32xf32>
    %cst_13 = arith.constant dense<0.000000e+00> : vector<2x32xf32>
    %43 = tpu.matmul %41, %42, %cst_13 {dimension_numbers = #tpu.dot_dimension_numbers<[1], [0], [0], [1], [0, 0, 1, 1], [], []>} : vector<2x8xf32>, vector<8x32xf32>, vector<2x32xf32> -> vector<2x32xf32>
    %44 = arith.addf %30, %43 : vector<2x32xf32>
    %45 = vector.extract_strided_slice %3 {offsets = [0, 24], sizes = [2, 8], strides = [1, 1]} : vector<2x32xf32> to vector<2x8xf32>
    %cst_14 = arith.constant dense<0xFF800000> : vector<2xf32>
    %46 = vector.multi_reduction <maximumf>, %45, %cst_14 [1] : vector<2x8xf32> to vector<2xf32>
    %47 = vector.shape_cast %46 : vector<2xf32> to vector<2x1xf32>
    %48 = vector.broadcast %47 : vector<2x1xf32> to vector<2x8xf32>
    %49 = arith.subf %45, %48 : vector<2x8xf32>
    %50 = math.exp %49 : vector<2x8xf32>
    %cst_15 = arith.constant dense<0.000000e+00> : vector<2xf32>
    %51 = vector.multi_reduction <add>, %50, %cst_15 [1] : vector<2x8xf32> to vector<2xf32>
    %52 = vector.shape_cast %51 : vector<2xf32> to vector<2x1xf32>
    %53 = tpu.reciprocal %52 : vector<2x1xf32> -> vector<2x1xf32>
    %54 = vector.broadcast %53 : vector<2x1xf32> to vector<2x8xf32>
    %55 = arith.mulf %50, %54 : vector<2x8xf32>
    %56 = vector.extract_strided_slice %2 {offsets = [24, 0], sizes = [8, 32], strides = [1, 1]} : vector<32x32xf32> to vector<8x32xf32>
    %cst_16 = arith.constant dense<0.000000e+00> : vector<2x32xf32>
    %57 = tpu.matmul %55, %56, %cst_16 {dimension_numbers = #tpu.dot_dimension_numbers<[1], [0], [0], [1], [0, 0, 1, 1], [], []>} : vector<2x8xf32>, vector<8x32xf32>, vector<2x32xf32> -> vector<2x32xf32>
    %58 = arith.addf %44, %57 : vector<2x32xf32>
    %c0_17 = arith.constant 0 : index
    %c0_18 = arith.constant 0 : index
    %59 = vector.load %arg4[%c0_17, %c0_18] : memref<1x32xf32, #tpu.memory_space<vmem>>, vector<1x32xf32>
    %60 = vector.broadcast %59 : vector<1x32xf32> to vector<2x32xf32>
    %61 = arith.addf %58, %60 : vector<2x32xf32>
    %cst_19 = arith.constant 0.000000e+00 : f32
    %62 = vector.broadcast %cst_19 : f32 to vector<2x32xf32>
    %63 = arith.maximumf %61, %62 : vector<2x32xf32>
    %c0_20 = arith.constant 0 : index
    %c0_21 = arith.constant 0 : index
    %64 = vector.load %arg5[%c0_20, %c0_21] : memref<2x32xf32, #tpu.memory_space<vmem>>, vector<2x32xf32>
    tpu.vector_store %arg5[%c0_20, %c0_21], %63 {strides = array<i32>} : memref<2x32xf32, #tpu.memory_space<vmem>>, vector<2x32xf32>,
    return
  }
  func.func @transform_0(%arg0: i32) -> (i32, i32) {
    %c0_i32 = arith.constant 0 : i32
    %c0_i32_0 = arith.constant 0 : i32
    return %arg0, %c0_i32 : i32, i32
  }
  func.func @transform_1(%arg0: i32) -> (i32, i32) {
    %c0_i32 = arith.constant 0 : i32
    %c0_i32_0 = arith.constant 0 : i32
    %c0_i32_1 = arith.constant 0 : i32
    return %c0_i32, %c0_i32_0 : i32, i32
  }
  func.func @transform_2(%arg0: i32) -> (i32, i32) {
    %c0_i32 = arith.constant 0 : i32
    %c0_i32_0 = arith.constant 0 : i32
    %c0_i32_1 = arith.constant 0 : i32
    return %c0_i32, %c0_i32_0 : i32, i32
  }
  func.func @transform_3(%arg0: i32) -> (i32, i32) {
    %c0_i32 = arith.constant 0 : i32
    %c0_i32_0 = arith.constant 0 : i32
    %c0_i32_1 = arith.constant 0 : i32
    return %c0_i32, %c0_i32_0 : i32, i32
  }
  func.func @transform_4(%arg0: i32) -> (i32, i32) {
    %c0_i32 = arith.constant 0 : i32
    %c0_i32_0 = arith.constant 0 : i32
    return %arg0, %c0_i32 : i32, i32
  }
}

</mosaic_0001>

<llo_original>
// kernel: tpu_custom_call.1
$region0: #{tpu_custom_call.1}
  #allocation0 [shape = 'u32[]', space=smem, size = 0x4, offset = 0x4, fixed_abs, tag = 'smem constant byte address 0x4 - core index']
  #allocation1 [shape = 'u32[144,128]{1,0:T(1,128)}', space=vmem, size = 0x12000, scoped, tag = 'internal scratch']
  %s0 = inlined_call_operand.vmem [shape: f32[2,16], index: 0, kind: input, shape index: {}]
  %s1 = inlined_call_operand.vmem [shape: f32[32,16], index: 1, kind: input, shape index: {}]
  %s2 = inlined_call_operand.vmem [shape: f32[32,32], index: 2, kind: input, shape index: {}]
  %s3 = inlined_call_operand.vmem [shape: f32[1,32], index: 3, kind: input, shape index: {}]
  %s4 = inlined_call_operand.hbm [shape: f32[2,32], index: 4, kind: output, shape index: {}]
  %s5 = sld [smem:[#allocation0]]
  $region26: #{tpu_custom_call.1} parent=0
    _
  %s7 = ssub.s32 1, %s5
  %s8 = scalar_select 0, %s7, %s5
  $region1: #{tpu_custom_call.1} parent=0
    #allocation2 [shape = 'u8[1024]{0}', space=vmem, size = 0x400, scoped, tag = 'output window, operand 0, single buffered']
    #allocation3 [shape = 's32[1]{0}', space=sflag, size = 0x4, scoped, tag = 'scoped memory for tpu_custom_call.1']
    %9 = vsyncpa [#allocation3], 0
    // Predicated region
    $region2: #{tpu_custom_call.1} parent=1 // pred_check
      _
    $region3: #{tpu_custom_call.1} parent=1 // pred_check_branch
      %11 = sbr.rel (0) target = $region5
    $region4: #{tpu_custom_call.1} parent=1 // pred_region
      _
    $region5: #{tpu_custom_call.1} parent=1 // pred_fallthru
      _
    // Predicated region
    $region6: #{tpu_custom_call.1} parent=1 // pred_check
      _
    $region7: #{tpu_custom_call.1} parent=1 // pred_check_branch
      %13 = sbr.rel (0) target = $region9
    $region8: #{tpu_custom_call.1} parent=1 // pred_region
      _
    $region9: #{tpu_custom_call.1} parent=1 // pred_fallthru
      _
    // Predicated region
    $region10: #{tpu_custom_call.1} parent=1 // pred_check
      _
    $region11: #{tpu_custom_call.1} parent=1 // pred_check_branch
      %15 = sbr.rel (0) target = $region13
    $region12: #{tpu_custom_call.1} parent=1 // pred_region
      _
    $region13: #{tpu_custom_call.1} parent=1 // pred_fallthru
      _
    // Predicated region
    $region14: #{tpu_custom_call.1} parent=1 // pred_check
      _
    $region15: #{tpu_custom_call.1} parent=1 // pred_check_branch
      %17 = sbr.rel (0) target = $region17
    $region16: #{tpu_custom_call.1} parent=1 // pred_region
      _
    $region17: #{tpu_custom_call.1} parent=1 // pred_fallthru
      _
    %v18 = vld [vmem:[%s0] sm:$0x3]
    %v19 = vld [vmem:[%s1] sm:$0xff]
    %v20 = vld [vmem:[%s1 + $0x8] sm:$0xff]
    %v21 = vld [vmem:[%s1 + $0x10] sm:$0xff]
    %v22 = vld [vmem:[%s1 + $0x18] sm:$0xff]
    %v23 = vld [vmem:[%s2] sm:$0xff]
    %v24 = vld [vmem:[%s2 + $0x8] sm:$0xff]
    %v25 = vld [vmem:[%s2 + $0x10] sm:$0xff]
    %v26 = vld [vmem:[%s2 + $0x18] sm:$0xff]
    %vm27 = vcmask 130048
    %v29 = vsel %vm27, %v18, 0
    %v32 = vsel %vm27, %v19, 0
    %v35 = vsel %vm27, %v20, 0
    %v38 = vsel %vm27, %v21, 0
    %v41 = vsel %vm27, %v22, 0
    %43 = vmatprep.subr.mxu0 0.0
    %44 = vmatpush1.xpose.msra.mxu0 0.0
    %45 = vmatprep.subr.mxu0 0.0
    %46 = vmatpush1.xpose.msra.mxu0 0.0
    %47 = vmatprep.subr.mxu0 0.0
    %48 = vmatpush1.xpose.msra.mxu0 0.0
    %49 = vmatprep.subr.mxu0 0.0
    %50 = vmatpush1.xpose.msra.mxu0 0.0
    %51 = vmatprep.subr.mxu0 0.0
    %52 = vmatpush1.xpose.msra.mxu0 0.0
    %53 = vmatprep.subr.mxu0 0.0
    %54 = vmatpush1.xpose.msra.mxu0 0.0
    %55 = vmatprep.subr.mxu0 0.0
    %56 = vmatpush1.xpose.msra.mxu0 0.0
    %57 = vmatprep.subr.mxu0 0.0
    %58 = vmatpush1.xpose.msra.mxu0 0.0
    %59 = vmatprep.subr.mxu0 0.0
    %60 = vmatpush1.xpose.msra.mxu0 0.0
    %61 = vmatprep.subr.mxu0 0.0
    %62 = vmatpush1.xpose.msra.mxu0 0.0
    %63 = vmatprep.subr.mxu0 0.0
    %64 = vmatpush1.xpose.msra.mxu0 0.0
    %65 = vmatprep.subr.mxu0 0.0
    %66 = vmatpush1.xpose.msra.mxu0 0.0
    %67 = vmatprep.subr.mxu0 0.0
    %68 = vmatpush1.xpose.msra.mxu0 %v41
    %69 = vmatprep.subr.mxu0 0.0
    %70 = vmatpush1.xpose.msra.mxu0 %v38
    %71 = vmatprep.subr.mxu0 0.0
    %72 = vmatpush1.xpose.msra.mxu0 %v35
    %73 = vmatprep.subr.mxu0 0.0
    %74 = vmatpush1.xpose.msra.mxu0 %v32
    %75 = vmatprep.subr.mxu0 0.0
    %76 = vmatpush2.xpose.msra.mxu0 0.0
    %77 = vmatprep.subr.mxu0 0.0
    %78 = vmatpush2.xpose.msra.mxu0 0.0
    %79 = vmatprep.subr.mxu0 0.0
    %80 = vmatpush2.xpose.msra.mxu0 0.0
    %81 = vmatprep.subr.mxu0 0.0
    %82 = vmatpush2.xpose.msra.mxu0 0.0
    %83 = vmatprep.subr.mxu0 0.0
    %84 = vmatpush2.xpose.msra.mxu0 0.0
    %85 = vmatprep.subr.mxu0 0.0
    %86 = vmatpush2.xpose.msra.mxu0 0.0
    %87 = vmatprep.subr.mxu0 0.0
    %88 = vmatpush2.xpose.msra.mxu0 0.0
    %89 = vmatprep.subr.mxu0 0.0
    %90 = vmatpush2.xpose.msra.mxu0 0.0
    %91 = vmatprep.subr.mxu0 0.0
    %92 = vmatpush2.xpose.msra.mxu0 0.0
    %93 = vmatprep.subr.mxu0 0.0
    %94 = vmatpush2.xpose.msra.mxu0 0.0
    %95 = vmatprep.subr.mxu0 0.0
    %96 = vmatpush2.xpose.msra.mxu0 0.0
    %97 = vmatprep.subr.mxu0 0.0
    %98 = vmatpush2.xpose.msra.mxu0 0.0
    %99 = vmatprep.subr.mxu0 0.0
    %100 = vmatpush2.xpose.msra.mxu0 0.0
    %101 = vmatprep.subr.mxu0 0.0
    %102 = vmatpush2.xpose.msra.mxu0 0.0
    %103 = vmatprep.subr.mxu0 0.0
    %104 = vmatpush2.xpose.msra.mxu0 0.0
    %105 = vmatprep.subr.mxu0 0.0
    %106 = vmatpush2.xpose.msra.mxu0 0.0
    %107 = vmatprep.mubr.f32.mxu0 0.0
    %108 = vmatmul.mubr.f32.gmra.mxu0 %v29
    %v109 = vpop.f32.mrf.mxu0
    %v110 = vadd.f32 0.0, %v109
    %v111 = vpop.f32.mrf.mxu0
    %112 = vdwg.mxu0
    %vm113 = vcmask 58368
    %v114 = vsel %vm113, %v110, -inf
    %115 = vmax.xlane.f32.xlu0 %v114
    %v116 = vpop.xlane.xlu0 %115
    %v117 = vsub.f32 %v110, %v116
    %v118 = vmul.f32 %v117, 1.442695
    %v119 = vpow.pop %v118
    %v120 = vsel %vm113, %v119, 0.0
    %121 = vadd.xlane.f32.xlu0 %v120
    %v122 = vpop.xlane.xlu0 %121
    %v123 = vrcp.pop %v122
    %v124 = vmul.f32 %v119, %v123
    %vm125 = vcmask 123968
    %v126 = vsel %vm125, %v110, -inf
    %127 = vmax.xlane.f32.xlu0 %v126
    %v128 = vpop.xlane.xlu0 %127
    %v129 = vsub.f32 %v110, %v128
    %v130 = vmul.f32 %v129, 1.442695
    %v131 = vpow.pop %v130
    %133 = vrot.lane.b32.xlu0 %v131, 120
    %v134 = vpop.permute.xlu0 %133
    %v136 = vsel %vm113, %v134, 0.0
    %137 = vadd.xlane.f32.xlu0 %v136
    %v138 = vpop.xlane.xlu0 %137
    %v139 = vrcp.pop %v138
    %v140 = vmul.f32 %v131, %v139
    %142 = vrot.lane.b32.xlu0 %v140, 120
    %v143 = vpop.permute.xlu0 %142
    %vm144 = vcmask 64512
    %v145 = vsel %vm144, %v143, 0
    %147 = vmatprep.subr.mxu0 0.0
    %148 = vmatpush1.msra.mxu0 0.0
    %149 = vmatprep.subr.mxu0 0.0
    %150 = vmatpush1.msra.mxu0 0.0
    %151 = vmatprep.subr.mxu0 0.0
    %152 = vmatpush1.msra.mxu0 0.0
    %153 = vmatprep.subr.mxu0 0.0
    %154 = vmatpush1.msra.mxu0 0.0
    %155 = vmatprep.subr.mxu0 0.0
    %156 = vmatpush1.msra.mxu0 0.0
    %157 = vmatprep.subr.mxu0 0.0
    %158 = vmatpush1.msra.mxu0 0.0
    %159 = vmatprep.subr.mxu0 0.0
    %160 = vmatpush1.msra.mxu0 0.0
    %161 = vmatprep.subr.mxu0 0.0
    %162 = vmatpush1.msra.mxu0 0.0
    %163 = vmatprep.subr.mxu0 0.0
    %164 = vmatpush1.msra.mxu0 0.0
    %165 = vmatprep.subr.mxu0 0.0
    %166 = vmatpush1.msra.mxu0 0.0
    %167 = vmatprep.subr.mxu0 0.0
    %168 = vmatpush1.msra.mxu0 0.0
    %169 = vmatprep.subr.mxu0 0.0
    %170 = vmatpush1.msra.mxu0 0.0
    %171 = vmatprep.subr.mxu0 0.0
    %172 = vmatpush1.msra.mxu0 0.0
    %173 = vmatprep.subr.mxu0 0.0
    %174 = vmatpush1.msra.mxu0 0.0
    %175 = vmatprep.subr.mxu0 0.0
    %176 = vmatpush1.msra.mxu0 0.0
    %177 = vmatprep.subr.mxu0 0.0
    %178 = vmatpush1.msra.mxu0 %v24
    %179 = vmatprep.subr.mxu0 0.0
    %180 = vmatpush2.msra.mxu0 0.0
    %181 = vmatprep.subr.mxu0 0.0
    %182 = vmatpush2.msra.mxu0 0.0
    %183 = vmatprep.subr.mxu0 0.0
    %184 = vmatpush2.msra.mxu0 0.0
    %185 = vmatprep.subr.mxu0 0.0
    %186 = vmatpush2.msra.mxu0 0.0
    %187 = vmatprep.subr.mxu0 0.0
    %188 = vmatpush2.msra.mxu0 0.0
    %189 = vmatprep.subr.mxu0 0.0
    %190 = vmatpush2.msra.mxu0 0.0
    %191 = vmatprep.subr.mxu0 0.0
    %192 = vmatpush2.msra.mxu0 0.0
    %193 = vmatprep.subr.mxu0 0.0
    %194 = vmatpush2.msra.mxu0 0.0
    %195 = vmatprep.subr.mxu0 0.0
    %196 = vmatpush2.msra.mxu0 0.0
    %197 = vmatprep.subr.mxu0 0.0
    %198 = vmatpush2.msra.mxu0 0.0
    %199 = vmatprep.subr.mxu0 0.0
    %200 = vmatpush2.msra.mxu0 0.0
    %201 = vmatprep.subr.mxu0 0.0
    %202 = vmatpush2.msra.mxu0 0.0
    %203 = vmatprep.subr.mxu0 0.0
    %204 = vmatpush2.msra.mxu0 0.0
    %205 = vmatprep.subr.mxu0 0.0
    %206 = vmatpush2.msra.mxu0 0.0
    %207 = vmatprep.subr.mxu0 0.0
    %208 = vmatpush2.msra.mxu0 0.0
    %209 = vmatprep.subr.mxu0 0.0
    %210 = vmatpush2.msra.mxu0 0.0
    %211 = vmatprep.mubr.f32.mxu0 0.0
    %212 = vmatmul.mubr.f32.gmra.mxu0 %v145
    %v213 = vpop.f32.mrf.mxu0
    %v214 = vadd.f32 0.0, %v213
    %v215 = vpop.f32.mrf.mxu0
    %216 = vdwg.mxu0
    %v218 = vsel %vm144, %v124, 0
    %220 = vmatprep.subr.mxu0 0.0
    %221 = vmatpush1.msra.mxu0 0.0
    %222 = vmatprep.subr.mxu0 0.0
    %223 = vmatpush1.msra.mxu0 0.0
    %224 = vmatprep.subr.mxu0 0.0
    %225 = vmatpush1.msra.mxu0 0.0
    %226 = vmatprep.subr.mxu0 0.0
    %227 = vmatpush1.msra.mxu0 0.0
    %228 = vmatprep.subr.mxu0 0.0
    %229 = vmatpush1.msra.mxu0 0.0
    %230 = vmatprep.subr.mxu0 0.0
    %231 = vmatpush1.msra.mxu0 0.0
    %232 = vmatprep.subr.mxu0 0.0
    %233 = vmatpush1.msra.mxu0 0.0
    %234 = vmatprep.subr.mxu0 0.0
    %235 = vmatpush1.msra.mxu0 0.0
    %236 = vmatprep.subr.mxu0 0.0
    %237 = vmatpush1.msra.mxu0 0.0
    %238 = vmatprep.subr.mxu0 0.0
    %239 = vmatpush1.msra.mxu0 0.0
    %240 = vmatprep.subr.mxu0 0.0
    %241 = vmatpush1.msra.mxu0 0.0
    %242 = vmatprep.subr.mxu0 0.0
    %243 = vmatpush1.msra.mxu0 0.0
    %244 = vmatprep.subr.mxu0 0.0
    %245 = vmatpush1.msra.mxu0 0.0
    %246 = vmatprep.subr.mxu0 0.0
    %247 = vmatpush1.msra.mxu0 0.0
    %248 = vmatprep.subr.mxu0 0.0
    %249 = vmatpush1.msra.mxu0 0.0
    %250 = vmatprep.subr.mxu0 0.0
    %251 = vmatpush1.msra.mxu0 %v23
    %252 = vmatprep.subr.mxu0 0.0
    %253 = vmatpush2.msra.mxu0 0.0
    %254 = vmatprep.subr.mxu0 0.0
    %255 = vmatpush2.msra.mxu0 0.0
    %256 = vmatprep.subr.mxu0 0.0
    %257 = vmatpush2.msra.mxu0 0.0
    %258 = vmatprep.subr.mxu0 0.0
    %259 = vmatpush2.msra.mxu0 0.0
    %260 = vmatprep.subr.mxu0 0.0
    %261 = vmatpush2.msra.mxu0 0.0
    %262 = vmatprep.subr.mxu0 0.0
    %263 = vmatpush2.msra.mxu0 0.0
    %264 = vmatprep.subr.mxu0 0.0
    %265 = vmatpush2.msra.mxu0 0.0
    %266 = vmatprep.subr.mxu0 0.0
    %267 = vmatpush2.msra.mxu0 0.0
    %268 = vmatprep.subr.mxu0 0.0
    %269 = vmatpush2.msra.mxu0 0.0
    %270 = vmatprep.subr.mxu0 0.0
    %271 = vmatpush2.msra.mxu0 0.0
    %272 = vmatprep.subr.mxu0 0.0
    %273 = vmatpush2.msra.mxu0 0.0
    %274 = vmatprep.subr.mxu0 0.0
    %275 = vmatpush2.msra.mxu0 0.0
    %276 = vmatprep.subr.mxu0 0.0
    %277 = vmatpush2.msra.mxu0 0.0
    %278 = vmatprep.subr.mxu0 0.0
    %279 = vmatpush2.msra.mxu0 0.0
    %280 = vmatprep.subr.mxu0 0.0
    %281 = vmatpush2.msra.mxu0 0.0
    %282 = vmatprep.subr.mxu0 0.0
    %283 = vmatpush2.msra.mxu0 0.0
    %284 = vmatprep.mubr.f32.mxu0 0.0
    %285 = vmatmul.mubr.f32.gmra.mxu0 %v218
    %v286 = vpop.f32.mrf.mxu0
    %v287 = vadd.f32 %v214, %v286
    %v288 = vpop.f32.mrf.mxu0
    %289 = vdwg.mxu0
    %vm290 = vcmask 189568
    %v291 = vsel %vm290, %v110, -inf
    %292 = vmax.xlane.f32.xlu0 %v291
    %v293 = vpop.xlane.xlu0 %292
    %v294 = vsub.f32 %v110, %v293
    %v295 = vmul.f32 %v294, 1.442695
    %v296 = vpow.pop %v295
    %298 = vrot.lane.b32.xlu0 %v296, 112
    %v299 = vpop.permute.xlu0 %298
    %v301 = vsel %vm113, %v299, 0.0
    %302 = vadd.xlane.f32.xlu0 %v301
    %v303 = vpop.xlane.xlu0 %302
    %v304 = vrcp.pop %v303
    %v305 = vmul.f32 %v296, %v304
    %307 = vrot.lane.b32.xlu0 %v305, 112
    %v308 = vpop.permute.xlu0 %307
    %v309 = vsel %vm144, %v308, 0
    %311 = vmatprep.subr.mxu0 0.0
    %312 = vmatpush1.msra.mxu0 0.0
    %313 = vmatprep.subr.mxu0 0.0
    %314 = vmatpush1.msra.mxu0 0.0
    %315 = vmatprep.subr.mxu0 0.0
    %316 = vmatpush1.msra.mxu0 0.0
    %317 = vmatprep.subr.mxu0 0.0
    %318 = vmatpush1.msra.mxu0 0.0
    %319 = vmatprep.subr.mxu0 0.0
    %320 = vmatpush1.msra.mxu0 0.0
    %321 = vmatprep.subr.mxu0 0.0
    %322 = vmatpush1.msra.mxu0 0.0
    %323 = vmatprep.subr.mxu0 0.0
    %324 = vmatpush1.msra.mxu0 0.0
    %325 = vmatprep.subr.mxu0 0.0
    %326 = vmatpush1.msra.mxu0 0.0
    %327 = vmatprep.subr.mxu0 0.0
    %328 = vmatpush1.msra.mxu0 0.0
    %329 = vmatprep.subr.mxu0 0.0
    %330 = vmatpush1.msra.mxu0 0.0
    %331 = vmatprep.subr.mxu0 0.0
    %332 = vmatpush1.msra.mxu0 0.0
    %333 = vmatprep.subr.mxu0 0.0
    %334 = vmatpush1.msra.mxu0 0.0
    %335 = vmatprep.subr.mxu0 0.0
    %336 = vmatpush1.msra.mxu0 0.0
    %337 = vmatprep.subr.mxu0 0.0
    %338 = vmatpush1.msra.mxu0 0.0
    %339 = vmatprep.subr.mxu0 0.0
    %340 = vmatpush1.msra.mxu0 0.0
    %341 = vmatprep.subr.mxu0 0.0
    %342 = vmatpush1.msra.mxu0 %v25
    %343 = vmatprep.subr.mxu0 0.0
    %344 = vmatpush2.msra.mxu0 0.0
    %345 = vmatprep.subr.mxu0 0.0
    %346 = vmatpush2.msra.mxu0 0.0
    %347 = vmatprep.subr.mxu0 0.0
    %348 = vmatpush2.msra.mxu0 0.0
    %349 = vmatprep.subr.mxu0 0.0
    %350 = vmatpush2.msra.mxu0 0.0
    %351 = vmatprep.subr.mxu0 0.0
    %352 = vmatpush2.msra.mxu0 0.0
    %353 = vmatprep.subr.mxu0 0.0
    %354 = vmatpush2.msra.mxu0 0.0
    %355 = vmatprep.subr.mxu0 0.0
    %356 = vmatpush2.msra.mxu0 0.0
    %357 = vmatprep.subr.mxu0 0.0
    %358 = vmatpush2.msra.mxu0 0.0
    %359 = vmatprep.subr.mxu0 0.0
    %360 = vmatpush2.msra.mxu0 0.0
    %361 = vmatprep.subr.mxu0 0.0
    %362 = vmatpush2.msra.mxu0 0.0
    %363 = vmatprep.subr.mxu0 0.0
    %364 = vmatpush2.msra.mxu0 0.0
    %365 = vmatprep.subr.mxu0 0.0
    %366 = vmatpush2.msra.mxu0 0.0
    %367 = vmatprep.subr.mxu0 0.0
    %368 = vmatpush2.msra.mxu0 0.0
    %369 = vmatprep.subr.mxu0 0.0
    %370 = vmatpush2.msra.mxu0 0.0
    %371 = vmatprep.subr.mxu0 0.0
    %372 = vmatpush2.msra.mxu0 0.0
    %373 = vmatprep.subr.mxu0 0.0
    %374 = vmatpush2.msra.mxu0 0.0
    %375 = vmatprep.mubr.f32.mxu0 0.0
    %376 = vmatmul.mubr.f32.gmra.mxu0 %v309
    %v377 = vpop.f32.mrf.mxu0
    %v378 = vadd.f32 0.0, %v377
    %v379 = vpop.f32.mrf.mxu0
    %380 = vdwg.mxu0
    %v381 = vadd.f32 %v287, %v378
    %vm382 = vcmask 255168
    %v383 = vsel %vm382, %v110, -inf
    %384 = vmax.xlane.f32.xlu0 %v383
    %v385 = vpop.xlane.xlu0 %384
    %v386 = vsub.f32 %v110, %v385
    %v387 = vmul.f32 %v386, 1.442695
    %v388 = vpow.pop %v387
    %390 = vrot.lane.b32.xlu0 %v388, 104
    %v391 = vpop.permute.xlu0 %390
    %v393 = vsel %vm113, %v391, 0.0
    %394 = vadd.xlane.f32.xlu0 %v393
    %v395 = vpop.xlane.xlu0 %394
    %v396 = vrcp.pop %v395
    %v397 = vmul.f32 %v388, %v396
    %399 = vrot.lane.b32.xlu0 %v397, 104
    %v400 = vpop.permute.xlu0 %399
    %v401 = vsel %vm144, %v400, 0
    %403 = vmatprep.subr.mxu0 0.0
    %404 = vmatpush1.msra.mxu0 0.0
    %405 = vmatprep.subr.mxu0 0.0
    %406 = vmatpush1.msra.mxu0 0.0
    %407 = vmatprep.subr.mxu0 0.0
    %408 = vmatpush1.msra.mxu0 0.0
    %409 = vmatprep.subr.mxu0 0.0
    %410 = vmatpush1.msra.mxu0 0.0
    %411 = vmatprep.subr.mxu0 0.0
    %412 = vmatpush1.msra.mxu0 0.0
    %413 = vmatprep.subr.mxu0 0.0
    %414 = vmatpush1.msra.mxu0 0.0
    %415 = vmatprep.subr.mxu0 0.0
    %416 = vmatpush1.msra.mxu0 0.0
    %417 = vmatprep.subr.mxu0 0.0
    %418 = vmatpush1.msra.mxu0 0.0
    %419 = vmatprep.subr.mxu0 0.0
    %420 = vmatpush1.msra.mxu0 0.0
    %421 = vmatprep.subr.mxu0 0.0
    %422 = vmatpush1.msra.mxu0 0.0
    %423 = vmatprep.subr.mxu0 0.0
    %424 = vmatpush1.msra.mxu0 0.0
    %425 = vmatprep.subr.mxu0 0.0
    %426 = vmatpush1.msra.mxu0 0.0
    %427 = vmatprep.subr.mxu0 0.0
    %428 = vmatpush1.msra.mxu0 0.0
    %429 = vmatprep.subr.mxu0 0.0
    %430 = vmatpush1.msra.mxu0 0.0
    %431 = vmatprep.subr.mxu0 0.0
    %432 = vmatpush1.msra.mxu0 0.0
    %433 = vmatprep.subr.mxu0 0.0
    %434 = vmatpush1.msra.mxu0 %v26
    %435 = vmatprep.subr.mxu0 0.0
    %436 = vmatpush2.msra.mxu0 0.0
    %437 = vmatprep.subr.mxu0 0.0
    %438 = vmatpush2.msra.mxu0 0.0
    %439 = vmatprep.subr.mxu0 0.0
    %440 = vmatpush2.msra.mxu0 0.0
    %441 = vmatprep.subr.mxu0 0.0
    %442 = vmatpush2.msra.mxu0 0.0
    %443 = vmatprep.subr.mxu0 0.0
    %444 = vmatpush2.msra.mxu0 0.0
    %445 = vmatprep.subr.mxu0 0.0
    %446 = vmatpush2.msra.mxu0 0.0
    %447 = vmatprep.subr.mxu0 0.0
    %448 = vmatpush2.msra.mxu0 0.0
    %449 = vmatprep.subr.mxu0 0.0
    %450 = vmatpush2.msra.mxu0 0.0
    %451 = vmatprep.subr.mxu0 0.0
    %452 = vmatpush2.msra.mxu0 0.0
    %453 = vmatprep.subr.mxu0 0.0
    %454 = vmatpush2.msra.mxu0 0.0
    %455 = vmatprep.subr.mxu0 0.0
    %456 = vmatpush2.msra.mxu0 0.0
    %457 = vmatprep.subr.mxu0 0.0
    %458 = vmatpush2.msra.mxu0 0.0
    %459 = vmatprep.subr.mxu0 0.0
    %460 = vmatpush2.msra.mxu0 0.0
    %461 = vmatprep.subr.mxu0 0.0
    %462 = vmatpush2.msra.mxu0 0.0
    %463 = vmatprep.subr.mxu0 0.0
    %464 = vmatpush2.msra.mxu0 0.0
    %465 = vmatprep.subr.mxu0 0.0
    %466 = vmatpush2.msra.mxu0 0.0
    %467 = vmatprep.mubr.f32.mxu0 0.0
    %468 = vmatmul.mubr.f32.gmra.mxu0 %v401
    %v469 = vpop.f32.mrf.mxu0
    %v470 = vadd.f32 0.0, %v469
    %v471 = vpop.f32.mrf.mxu0
    %472 = vdwg.mxu0
    %v473 = vadd.f32 %v381, %v470
    %v474 = vld [vmem:[%s3] sm:$0x1]
    %v476 = vlaneseq
    %v477 = vshrl.u32 %v476, 7
    %v478 = vsub.s32 0, %v477
    %v479 = vrot.slane %v474, %v478
    %v481 = vadd.f32 %v473, %v479
    %v482 = vmax.f32 %v481, 0.0
    %vm483 = vcmask 254976
    %484 = vst.msk [vmem:[#allocation2] sm:$0x3] %vm483, %v482
    // Predicated region
    $region18: #{tpu_custom_call.1} parent=1 // pred_check
      _
    $region19: #{tpu_custom_call.1} parent=1 // pred_check_branch
      %486 = sbr.rel (0) target = $region21
    $region20: #{tpu_custom_call.1} parent=1 // pred_region
      %s488 = ssub.s32 32, 32
      %489 = vsyncadd [#allocation3], %s488
      %s491 = sshll.u32 [#allocation2], 4
      %s492 = int_to_ptr.vmem [resolvable:$true] %s491
      %494 = dma.vmem_to_hbm [thread:$0]  %s492, 32, %s4, [#allocation3]
    $region21: #{tpu_custom_call.1} parent=1 // pred_fallthru
      _
    // Predicated region
    $region22: #{tpu_custom_call.1} parent=1 // pred_check
      _
    $region23: #{tpu_custom_call.1} parent=1 // pred_check_branch
      %496 = sbr.rel (0) target = $region25
    $region24: #{tpu_custom_call.1} parent=1 // pred_region
      %497 = dma.done [#allocation3], 32
    $region25: #{tpu_custom_call.1} parent=1 // pred_fallthru
      _
    %498 = vsyncpa [#allocation3], 1

</llo_original>
